<compile_context>
chip_gen: v7x
topology: tpu7x:2x2x1
jax: 0.10.0
libtpu: 0.0.40
codegen_flags: <defaults>
</compile_context>

<pallas_src>
import functools

import jax
import jax.numpy as jnp
from jax import lax
from jax.experimental import pallas as pl
from jax.experimental.pallas import tpu as pltpu

_VMEM_LIMIT = 32 * 1024 * 1024  # <= scoped default on v6e/v7x, < physical on v5e


def _logits_t(x_tile, w, b_col):
    """Transposed logits: (C, TB) = W(C,D) @ x_tile(TB,D)^T + b.

    Batch lives on the lane (minor) axis -> every downstream store is
    lane-dense and intermediates are only C=3 sublanes wide.
    """
    lt = lax.dot_general(
        w, x_tile,
        dimension_numbers=(((1,), (1,)), ((), ())),   # contract D with D
        preferred_element_type=jnp.float32)            # (C, TB)
    return lt + b_col                                   # + (C, 1) lane-broadcast


def _probs_kernel(x_ref, w_ref, b_ref, probs_t_ref):
    lt = _logits_t(x_ref[...], w_ref[...], b_ref[...])      # (C, TB)
    m = jnp.max(lt, axis=0, keepdims=True)                   # (1, TB)
    e = jnp.exp(lt - m)
    probs_t_ref[...] = e / jnp.sum(e, axis=0, keepdims=True)


def _loss_kernel(x_ref, w_ref, b_ref, y_ref, part_ref, *, tile_b, total_b):
    # Cross-entropy on the LOGITS (as in the PyTorch module), one-hot built
    # in-kernel; each grid step emits its own partial sum (no serialization).
    i = pl.program_id(0)

    lt = _logits_t(x_ref[...], w_ref[...], b_ref[...])       # (C, TB)
    m = jnp.max(lt, axis=0, keepdims=True)
    shifted = lt - m
    lse = jnp.log(jnp.sum(jnp.exp(shifted), axis=0, keepdims=True))
    log_probs = shifted - lse                                 # (C, TB)

    classes = lax.broadcasted_iota(jnp.int32, lt.shape, 0)    # (C, TB)
    onehot = classes == y_ref[...]                            # vs (1, TB)

    # Mask out padded columns of a partial last tile (B % TB != 0).
    col = i * tile_b + lax.broadcasted_iota(jnp.int32, (1, lt.shape[1]), 1)
    valid = col < total_b                                     # (1, TB)

    picked = jnp.where(onehot & valid, log_probs, 0.0)
    partial = -jnp.sum(picked)

    # Write the per-tile partial into element [0, 0] of this step's own
    # (8, 128) output block; everything else is zero.
    r = lax.broadcasted_iota(jnp.int32, part_ref.shape, 0)
    c = lax.broadcasted_iota(jnp.int32, part_ref.shape, 1)
    part_ref[...] = jnp.where((r == 0) & (c == 0), partial, 0.0)


def torch_model_forward(x, weight, bias, y=None, *, tile_b=8192):
    """Replicates TorchModel.forward.

    x: (B, D) float32
    weight: (3, D) float32 (PyTorch nn.Linear layout, used as-is)
    bias: (3,) float32
    y: optional (B,) int32 class indices.
    Returns softmax probs (B, 3) if y is None, else scalar mean CE loss.
    """
    B, D = x.shape
    C = weight.shape[0]
    b_col = bias.reshape(C, 1).astype(jnp.float32)

    # Batch tile: full batch if it fits, else a multiple of 128 (lane-aligned).
    if B <= tile_b:
        tb = B
    else:
        tb = max(128, (tile_b // 128) * 128)
    nt = pl.cdiv(B, tb)
    grid = (nt,)

    x_spec = pl.BlockSpec((tb, D), lambda i: (i, 0))      # pipelined / streamed
    w_spec = pl.BlockSpec((C, D), lambda i: (0, 0))       # stays resident
    b_spec = pl.BlockSpec((C, 1), lambda i: (0, 0))       # stays resident
    params = pltpu.CompilerParams(
        dimension_semantics=("parallel",),                # v7x: shard over 2 TCs
        vmem_limit_bytes=_VMEM_LIMIT)

    if y is None:
        cost = pl.CostEstimate(
            flops=2 * B * D * C,
            transcendentals=B * C,
            bytes_accessed=4 * (B * D + C * D + C + C * B))
        probs_t = pl.pallas_call(
            _probs_kernel,
            out_shape=jax.ShapeDtypeStruct((C, B), jnp.float32),
            grid=grid,
            in_specs=[x_spec, w_spec, b_spec],
            # Lane-dense output: batch on the lane axis -> contiguous writeback.
            out_specs=pl.BlockSpec((C, tb), lambda i: (0, i)),
            compiler_params=params,
            cost_estimate=cost,
        )(x, weight, b_col)
        return probs_t.T   # (B, 3): cheap wrapper transpose, matches nn.Softmax(dim=1)
    else:
        y_row = y.reshape(1, B).astype(jnp.int32)
        cost = pl.CostEstimate(
            flops=2 * B * D * C,
            transcendentals=B * C + B,
            bytes_accessed=4 * (B * D + C * D + C + B) + 4 * nt * 8 * 128)
        kernel = functools.partial(_loss_kernel, tile_b=tb, total_b=B)
        partials = pl.pallas_call(
            kernel,
            # One (8,128) partial block per tile: parallel-safe, tile-aligned.
            out_shape=jax.ShapeDtypeStruct((nt * 8, 128), jnp.float32),
            grid=grid,
            in_specs=[x_spec, w_spec, b_spec,
                      pl.BlockSpec((1, tb), lambda i: (0, i))],
            out_specs=pl.BlockSpec((8, 128), lambda i: (i, 0)),
            compiler_params=params,
            cost_estimate=cost,
        )(x, weight, b_col, y_row)
        # nn.CrossEntropyLoss default reduction='mean'
        return jnp.sum(partials) / B


if __name__ == "__main__":
    key = jax.random.PRNGKey(0)
    C = 3

    def reference(x, w, b, y):
        logits = x @ w.T + b
        probs = jax.nn.softmax(logits, axis=1)
        lp = jax.nn.log_softmax(logits, axis=1)
        loss = -jnp.mean(lp[jnp.arange(x.shape[0]), y])
        return probs, loss

    # Small single-tile case, plus a multi-tile case with a partial last tile
    # (exercises OOB masking / discarded output columns on both paths).
    for (B, D, tb) in [(8, 32, 8192), (200, 32, 128)]:
        kx, kw, kb, ky, key = jax.random.split(key, 5)
        x = jax.random.normal(kx, (B, D), dtype=jnp.float32)
        # Deterministic PyTorch-like uniform(-1/sqrt(D), 1/sqrt(D)) init
        bound = 1.0 / jnp.sqrt(jnp.float32(D))
        weight = jax.random.uniform(kw, (C, D), minval=-bound, maxval=bound,
                                    dtype=jnp.float32)
        bias = jax.random.uniform(kb, (C,), minval=-bound, maxval=bound,
                                  dtype=jnp.float32)
        y = jax.random.randint(ky, (B,), 0, C, dtype=jnp.int32)

        # Inference path: softmax probabilities
        probs = jax.block_until_ready(
            torch_model_forward(x, weight, bias, tile_b=tb))
        # Training path: mean cross-entropy loss on logits
        loss = jax.block_until_ready(
            torch_model_forward(x, weight, bias, y, tile_b=tb))

        probs_ref, loss_ref = reference(x, weight, bias, y)
        assert probs.shape == (B, C) and loss.shape == ()
        assert jnp.allclose(probs, probs_ref, atol=1e-5), "probs mismatch"
        assert jnp.allclose(loss, loss_ref, atol=1e-5), "loss mismatch"

    print("KERNEL_OK")
</pallas_src>

<mosaic_0001>
module attributes {stable_mosaic.version = 11 : i64} {
  func.func @_probs_kernel(%arg0: i32, %arg1: memref<8x32xf32, #tpu.memory_space<vmem>>, %arg2: memref<3x32xf32, #tpu.memory_space<vmem>>, %arg3: memref<3x1xf32, #tpu.memory_space<vmem>>, %arg4: memref<3x8xf32, #tpu.memory_space<vmem>>) attributes {dimension_semantics = [#tpu.dimension_semantics<parallel>], iteration_bounds = array<i64: 1>, scalar_prefetch = 0 : i64, scratch_operands = 0 : i64, tpu.core_type = #tpu.core_type<tc>, window_params = [{transform_indices = @transform_0, window_bounds = array<i64: 8, 32>}, {pipeline_mode = #tpu.pipeline_mode<synchronous>, transform_indices = @transform_1, window_bounds = array<i64: 3, 32>}, {pipeline_mode = #tpu.pipeline_mode<synchronous>, transform_indices = @transform_2, window_bounds = array<i64: 3, 1>}, {transform_indices = @transform_3, window_bounds = array<i64: 3, 8>}]} {
    %c0 = arith.constant 0 : index
    %c0_0 = arith.constant 0 : index
    %0 = vector.load %arg1[%c0, %c0_0] : memref<8x32xf32, #tpu.memory_space<vmem>>, vector<8x32xf32>
    %c0_1 = arith.constant 0 : index
    %c0_2 = arith.constant 0 : index
    %1 = vector.load %arg2[%c0_1, %c0_2] : memref<3x32xf32, #tpu.memory_space<vmem>>, vector<3x32xf32>
    %c0_3 = arith.constant 0 : index
    %c0_4 = arith.constant 0 : index
    %2 = vector.load %arg3[%c0_3, %c0_4] : memref<3x1xf32, #tpu.memory_space<vmem>>, vector<3x1xf32>
    %cst = arith.constant dense<0.000000e+00> : vector<3x8xf32>
    %3 = tpu.matmul %1, %0, %cst {dimension_numbers = #tpu.dot_dimension_numbers<[1], [1], [0], [0], [0, 0, 1, 0], [], []>} : vector<3x32xf32>, vector<8x32xf32>, vector<3x8xf32> -> vector<3x8xf32>
    %4 = vector.broadcast %2 : vector<3x1xf32> to vector<3x8xf32>
    %5 = arith.addf %3, %4 : vector<3x8xf32>
    %cst_5 = arith.constant dense<0xFF800000> : vector<8xf32>
    %6 = vector.multi_reduction <maximumf>, %5, %cst_5 [0] : vector<3x8xf32> to vector<8xf32>
    %7 = vector.shape_cast %6 : vector<8xf32> to vector<1x8xf32>
    %8 = vector.broadcast %7 : vector<1x8xf32> to vector<3x8xf32>
    %9 = arith.subf %5, %8 : vector<3x8xf32>
    %10 = math.exp %9 : vector<3x8xf32>
    %cst_6 = arith.constant dense<0.000000e+00> : vector<8xf32>
    %11 = vector.multi_reduction <add>, %10, %cst_6 [0] : vector<3x8xf32> to vector<8xf32>
    %12 = vector.shape_cast %11 : vector<8xf32> to vector<1x8xf32>
    %13 = vector.broadcast %12 : vector<1x8xf32> to vector<3x8xf32>
    %14 = arith.divf %10, %13 : vector<3x8xf32>
    %c0_7 = arith.constant 0 : index
    %c0_8 = arith.constant 0 : index
    %15 = vector.load %arg4[%c0_7, %c0_8] : memref<3x8xf32, #tpu.memory_space<vmem>>, vector<3x8xf32>
    tpu.vector_store %arg4[%c0_7, %c0_8], %14 {strides = array<i32>} : memref<3x8xf32, #tpu.memory_space<vmem>>, vector<3x8xf32>,
    return
  }
  func.func @transform_0(%arg0: i32) -> (i32, i32) {
    %c0_i32 = arith.constant 0 : i32
    %c0_i32_0 = arith.constant 0 : i32
    return %arg0, %c0_i32 : i32, i32
  }
  func.func @transform_1(%arg0: i32) -> (i32, i32) {
    %c0_i32 = arith.constant 0 : i32
    %c0_i32_0 = arith.constant 0 : i32
    %c0_i32_1 = arith.constant 0 : i32
    return %c0_i32, %c0_i32_0 : i32, i32
  }
  func.func @transform_2(%arg0: i32) -> (i32, i32) {
    %c0_i32 = arith.constant 0 : i32
    %c0_i32_0 = arith.constant 0 : i32
    %c0_i32_1 = arith.constant 0 : i32
    return %c0_i32, %c0_i32_0 : i32, i32
  }
  func.func @transform_3(%arg0: i32) -> (i32, i32) {
    %c0_i32 = arith.constant 0 : i32
    %c0_i32_0 = arith.constant 0 : i32
    return %c0_i32, %arg0 : i32, i32
  }
}

</mosaic_0001>

<llo_original>
// kernel: tpu_custom_call.1
$region0: #{tpu_custom_call.1}
  #allocation0 [shape = 'u32[]', space=smem, size = 0x4, offset = 0x4, fixed_abs, tag = 'smem constant byte address 0x4 - core index']
  #allocation1 [shape = 'u32[144,128]{1,0:T(1,128)}', space=vmem, size = 0x12000, scoped, tag = 'internal scratch']
  %s0 = inlined_call_operand.hbm [shape: f32[8,32], index: 0, kind: input, shape index: {}]
  %s1 = inlined_call_operand.vmem [shape: f32[3,32], index: 1, kind: input, shape index: {}]
  %s2 = inlined_call_operand.vmem [shape: f32[3,1], index: 2, kind: input, shape index: {}]
  %s3 = inlined_call_operand.hbm [shape: f32[3,8], index: 3, kind: output, shape index: {}]
  %s4 = sld [smem:[#allocation0]]
  $region26: #{tpu_custom_call.1} parent=0
    _
  %s6 = ssub.s32 1, %s4
  %s7 = scalar_select 0, %s6, %s4
  $region1: #{tpu_custom_call.1} parent=0
    #allocation2 [shape = 'u8[4096]{0}', space=vmem, size = 0x1000, scoped, tag = 'input window, operand 0, single buffered']
    #allocation3 [shape = 's32[1]{0}', space=sflag, size = 0x4, scoped, tag = 'scoped memory for tpu_custom_call.1']
    #allocation4 [shape = 's32[1]{0}', space=sflag, size = 0x4, scoped, tag = 'scoped memory for tpu_custom_call.1']
    #allocation5 [shape = 'u8[2048]{0}', space=vmem, size = 0x800, scoped, tag = 'output window, operand 0, single buffered']
    %8 = vsyncpa [#allocation3], 0
    %9 = vsyncpa [#allocation4], 0
    // Predicated region
    $region2: #{tpu_custom_call.1} parent=1 // pred_check
      _
    $region3: #{tpu_custom_call.1} parent=1 // pred_check_branch
      %11 = sbr.rel (0) target = $region5
    $region4: #{tpu_custom_call.1} parent=1 // pred_region
      %s13 = ssub.s32 128, 128
      %14 = vsyncadd [#allocation3], %s13
      %s16 = sshll.u32 [#allocation2], 4
      %s17 = int_to_ptr.vmem [resolvable:$true] %s16
      %19 = dma.hbm_to_vmem [thread:$0]  %s0, 128, %s17, [#allocation3]
    $region5: #{tpu_custom_call.1} parent=1 // pred_fallthru
      _
    // Predicated region
    $region6: #{tpu_custom_call.1} parent=1 // pred_check
      _
    $region7: #{tpu_custom_call.1} parent=1 // pred_check_branch
      %21 = sbr.rel (0) target = $region9
    $region8: #{tpu_custom_call.1} parent=1 // pred_region
      _
    $region9: #{tpu_custom_call.1} parent=1 // pred_fallthru
      _
    // Predicated region
    $region10: #{tpu_custom_call.1} parent=1 // pred_check
      _
    $region11: #{tpu_custom_call.1} parent=1 // pred_check_branch
      %23 = sbr.rel (0) target = $region13
    $region12: #{tpu_custom_call.1} parent=1 // pred_region
      _
    $region13: #{tpu_custom_call.1} parent=1 // pred_fallthru
      _
    // Predicated region
    $region14: #{tpu_custom_call.1} parent=1 // pred_check
      _
    $region15: #{tpu_custom_call.1} parent=1 // pred_check_branch
      %25 = sbr.rel (0) target = $region17
    $region16: #{tpu_custom_call.1} parent=1 // pred_region
      %26 = dma.done [#allocation3], 128
    $region17: #{tpu_custom_call.1} parent=1 // pred_fallthru
      _
    %v27 = vld [vmem:[#allocation2] sm:$0xff]
    %v28 = vld [vmem:[%s1] sm:$0x7]
    %v29 = vld [vmem:[%s2] sm:$0x7]
    %31 = vset.pattern.permute.xlu0 0
    %32 = vperm.xlu0 %31, %v29
    %v33 = vpop.permute.xlu0 %32
    %vm35 = vcmask 261120
    %v37 = vsel %vm35, %v28, 0
    %v40 = vsel %vm35, %v27, 0
    %42 = vmatprep.subr.mxu0 0.0
    %43 = vmatpush1.xpose.msra.mxu0 %v40
    %44 = vmatprep.subr.mxu0 0.0
    %45 = vmatpush1.xpose.msra.mxu0 0.0
    %46 = vmatprep.subr.mxu0 0.0
    %47 = vmatpush1.xpose.msra.mxu0 0.0
    %48 = vmatprep.subr.mxu0 0.0
    %49 = vmatpush1.xpose.msra.mxu0 0.0
    %50 = vmatprep.subr.mxu0 0.0
    %51 = vmatpush1.xpose.msra.mxu0 0.0
    %52 = vmatprep.subr.mxu0 0.0
    %53 = vmatpush1.xpose.msra.mxu0 0.0
    %54 = vmatprep.subr.mxu0 0.0
    %55 = vmatpush1.xpose.msra.mxu0 0.0
    %56 = vmatprep.subr.mxu0 0.0
    %57 = vmatpush1.xpose.msra.mxu0 0.0
    %58 = vmatprep.subr.mxu0 0.0
    %59 = vmatpush1.xpose.msra.mxu0 0.0
    %60 = vmatprep.subr.mxu0 0.0
    %61 = vmatpush1.xpose.msra.mxu0 0.0
    %62 = vmatprep.subr.mxu0 0.0
    %63 = vmatpush1.xpose.msra.mxu0 0.0
    %64 = vmatprep.subr.mxu0 0.0
    %65 = vmatpush1.xpose.msra.mxu0 0.0
    %66 = vmatprep.subr.mxu0 0.0
    %67 = vmatpush1.xpose.msra.mxu0 0.0
    %68 = vmatprep.subr.mxu0 0.0
    %69 = vmatpush1.xpose.msra.mxu0 0.0
    %70 = vmatprep.subr.mxu0 0.0
    %71 = vmatpush1.xpose.msra.mxu0 0.0
    %72 = vmatprep.subr.mxu0 0.0
    %73 = vmatpush1.xpose.msra.mxu0 0.0
    %74 = vmatprep.subr.mxu0 0.0
    %75 = vmatpush1.xpose.msra.mxu0 0.0
    %76 = vmatprep.subr.mxu0 0.0
    %77 = vmatpush1.xpose.msra.mxu0 0.0
    %78 = vmatprep.subr.mxu0 0.0
    %79 = vmatpush1.xpose.msra.mxu0 0.0
    %80 = vmatprep.subr.mxu0 0.0
    %81 = vmatpush1.xpose.msra.mxu0 0.0
    %82 = vmatprep.subr.mxu0 0.0
    %83 = vmatpush1.xpose.msra.mxu0 0.0
    %84 = vmatprep.subr.mxu0 0.0
    %85 = vmatpush1.xpose.msra.mxu0 0.0
    %86 = vmatprep.subr.mxu0 0.0
    %87 = vmatpush1.xpose.msra.mxu0 0.0
    %88 = vmatprep.subr.mxu0 0.0
    %89 = vmatpush1.xpose.msra.mxu0 0.0
    %90 = vmatprep.subr.mxu0 0.0
    %91 = vmatpush1.xpose.msra.mxu0 0.0
    %92 = vmatprep.subr.mxu0 0.0
    %93 = vmatpush1.xpose.msra.mxu0 0.0
    %94 = vmatprep.subr.mxu0 0.0
    %95 = vmatpush1.xpose.msra.mxu0 0.0
    %96 = vmatprep.subr.mxu0 0.0
    %97 = vmatpush1.xpose.msra.mxu0 0.0
    %98 = vmatprep.subr.mxu0 0.0
    %99 = vmatpush1.xpose.msra.mxu0 0.0
    %100 = vmatprep.subr.mxu0 0.0
    %101 = vmatpush1.xpose.msra.mxu0 0.0
    %102 = vmatprep.subr.mxu0 0.0
    %103 = vmatpush1.xpose.msra.mxu0 0.0
    %104 = vmatprep.subr.mxu0 0.0
    %105 = vmatpush1.xpose.msra.mxu0 0.0
    %106 = vmatprep.mubr.f32.mxu0 0.0
    %107 = vmatmul.mubr.f32.gmra.mrb[0].mxu0 %v37
    %v108 = vpop.f32.mrb[0].mxu0
    %v109 = vadd.f32 %v33, %v108
    %v110 = vpop.f32.mrb[0].mxu0
    %111 = vdwg.mxu0
    %vm112 = vcmask 59392
    %v113 = vsel %vm112, %v109, -inf
    %v114 = vrot.slane %v113, 4
    %v115 = vmax.f32 %v113, %v114
    %v116 = vrot.slane %v115, 2
    %v117 = vmax.f32 %v115, %v116
    %v118 = vrot.slane %v117, 1
    %v119 = vmax.f32 %v117, %v118
    %v120 = vsub.f32 %v109, %v119
    %v121 = vmul.f32 %v120, 1.442695
    %v122 = vpow.pop %v121
    %v123 = vsel %vm112, %v122, 0.0
    %v124 = vrot.slane %v123, 4
    %v125 = vadd.f32 %v123, %v124
    %v126 = vrot.slane %v125, 2
    %v127 = vadd.f32 %v125, %v126
    %v128 = vrot.slane %v127, 1
    %v129 = vadd.f32 %v127, %v128
    %v130 = vrcp.pop %v129
    %v131 = vmul.f32 %v122, %v130
    %132 = vst.msk [vmem:[#allocation5] sm:$0x7] %vm112, %v131
    // Predicated region
    $region18: #{tpu_custom_call.1} parent=1 // pred_check
      _
    $region19: #{tpu_custom_call.1} parent=1 // pred_check_branch
      %134 = sbr.rel (0) target = $region21
    $region20: #{tpu_custom_call.1} parent=1 // pred_region
      %s136 = ssub.s32 64, 64
      %137 = vsyncadd [#allocation4], %s136
      %s139 = sshll.u32 [#allocation5], 4
      %s140 = int_to_ptr.vmem [resolvable:$true] %s139
      %142 = dma.vmem_to_hbm [thread:$0]  %s140, 64, %s3, [#allocation4]
    $region21: #{tpu_custom_call.1} parent=1 // pred_fallthru
      _
    // Predicated region
    $region22: #{tpu_custom_call.1} parent=1 // pred_check
      _
    $region23: #{tpu_custom_call.1} parent=1 // pred_check_branch
      %144 = sbr.rel (0) target = $region25
    $region24: #{tpu_custom_call.1} parent=1 // pred_region
      %145 = dma.done [#allocation4], 64
    $region25: #{tpu_custom_call.1} parent=1 // pred_fallthru
      _
    %146 = vsyncpa [#allocation3], 1
    %147 = vsyncpa [#allocation4], 1

</llo_original>
